<compile_context>
chip_gen: v7x
topology: tpu7x:2x2x1
jax: 0.10.0
libtpu: 0.0.40
codegen_flags: <defaults>
</compile_context>

<pallas_src>
import jax
import jax.numpy as jnp
from jax.experimental import pallas as pl
from jax.experimental.pallas import tpu as pltpu


def attention2d_kernel(x_ref, w1t_ref, w2t_ref, b2_ref, o_ref, acc_ref):
    # x_ref:   (B_t, C, HW_t)   streamed tile of activations
    # w1t_ref: (C, hidden)      fc1 weight, pre-transposed, pre-scaled by 1/(H*W)
    # w2t_ref: (hidden, K)      fc2 weight, pre-transposed, pre-scaled by 1/T
    # b2_ref:  (1, K)           fc2 bias, pre-scaled by 1/T
    # o_ref:   (B_t, K)         softmax attention weights
    # acc_ref: (B_t, C) f32     pooled-sum accumulator (resident across HW axis)
    hw_idx = pl.program_id(1)

    @pl.when(hw_idx == 0)
    def _():
        acc_ref[...] = jnp.zeros_like(acc_ref)

    # Hot loop: lane-reduce this HW tile and accumulate in f32 regardless of
    # the streamed dtype.
    acc_ref[...] += jnp.sum(x_ref[...].astype(jnp.float32), axis=-1)

    @pl.when(hw_idx == pl.num_programs(1) - 1)
    def _():
        pooled = acc_ref[...]                      # HW-sum; 1/(H*W) lives in w1t
        # fc1 (1x1 conv, no bias) + ReLU
        h = jnp.dot(pooled, w1t_ref[...], preferred_element_type=jnp.float32)
        h = jnp.maximum(h, 0.0)
        # fc2 (1x1 conv, bias); 1/temperature already folded into w2t / b2
        logits = jnp.dot(h, w2t_ref[...], preferred_element_type=jnp.float32)
        logits = logits + b2_ref[...]
        # softmax over K — exact division (epilogue-only, accuracy is free)
        z = logits - jnp.max(logits, axis=-1, keepdims=True)
        e = jnp.exp(z)
        denom = jnp.sum(e, axis=-1, keepdims=True)
        o_ref[...] = e / denom


def _largest_aligned_divisor(n, align, cap):
    """Largest d with d % align == 0, n % d == 0 and d <= min(n, cap); else None."""
    best = None
    d = align
    limit = min(n, cap)
    while d <= limit:
        if n % d == 0:
            best = d
        d += align
    return best


def _vmem_limit_bytes():
    """~3/4 of physical VMEM (96 MiB on v5e/v6e, 48 MiB on v7x).

    Falls back to the most conservative assumption (64 MiB physical -> 48 MiB
    limit) if the hardware query is unavailable, so we never OOM on v7x.
    """
    try:
        cap = int(pltpu.get_tpu_info().vmem_capacity_bytes)
    except Exception:
        cap = 64 * 1024 * 1024
    return (cap * 3) // 4


def _select_tiles(B, C, HW, itemsize, per_buffer_bytes):
    """Pick HW tile first (long DMA rows), then derive the batch tile from budget."""
    min_bt = 8 if (B >= 8 and B % 8 == 0) else B
    if HW % 128 == 0:
        # Longest lane rows that keep one (min_bt, C, HW_t) slab within budget,
        # never shorter than 512 lanes (>= 2 KiB f32 rows for HBM efficiency).
        cap = per_buffer_bytes // max(1, min_bt * C * itemsize)
        cap = min(HW, max(512, cap))
        HW_t = _largest_aligned_divisor(HW, 128, cap) or HW
    else:
        HW_t = HW                              # unaligned spatial size: whole row
    fit = per_buffer_bytes // max(1, C * HW_t * itemsize)
    if B >= 8 and B % 8 == 0:
        cap_bt = max(8, (fit // 8) * 8)        # multiple of 8 (out-block sublane)
        if B >= 16:
            cap_bt = min(cap_bt, B // 2)       # >=2 parallel blocks (v7x megacore)
        B_t = _largest_aligned_divisor(B, 8, cap_bt) or 8
    else:
        B_t = B                                # small / unaligned batch: full B
    return B_t, HW_t


def attention2d_forward(x_nchw, w1, w2, b2, temperature, *, x_tile_bytes=None):
    """x_nchw: (B, C, H, W). Returns (B, K) softmax attention weights (f32)."""
    B, C, H, W = x_nchw.shape
    HW = H * W
    hidden = w1.shape[0]
    K = w2.shape[0]

    # Stream x in its native dtype (bf16 halves HBM traffic if upstream is
    # bf16); the kernel widens to f32 before accumulating.
    x_flat = x_nchw.reshape(B, C, HW)
    itemsize = x_flat.dtype.itemsize

    # One-time constant folding into the (tiny) weights:
    #   mean over HW      -> in-kernel sum, 1/(H*W) folded into w1
    #   softmax(z / T)    -> 1/T folded into w2 and b2
    # Weights are also pre-transposed so the kernel does no in-kernel .T.
    w1t = (w1.astype(jnp.float32) / jnp.float32(HW)).T            # (C, hidden)
    w2t = (w2.astype(jnp.float32) / jnp.float32(temperature)).T   # (hidden, K)
    b2s = (b2.astype(jnp.float32) / jnp.float32(temperature)).reshape(1, K)

    # --- per-generation VMEM budget & tile selection -------------------------
    vmem_limit = _vmem_limit_bytes()            # ~96 MiB v5e/v6e, ~48 MiB v7x
    weight_bytes = 4 * (C * hidden + hidden * K + K)
    if x_tile_bytes is None:
        # Target 8-12 MiB per x buffer; leave room for the (default
        # double-buffered) weights, accumulator/output blocks and slack.
        x_tile_bytes = min(12 * 1024 * 1024,
                           max(2 * 1024 * 1024,
                               (vmem_limit - 2 * weight_bytes - (4 << 20)) // 2))
    B_t, HW_t = _select_tiles(B, C, HW, itemsize, int(x_tile_bytes))

    grid = (B // B_t, HW // HW_t)

    cost = pl.CostEstimate(
        flops=int(B * C * HW + 2 * B * C * hidden + 2 * B * hidden * K),
        transcendentals=int(B * K),
        bytes_accessed=int(x_flat.size * itemsize
                           + (w1t.size + w2t.size + b2s.size + B * K) * 4),
    )

    return pl.pallas_call(
        attention2d_kernel,
        out_shape=jax.ShapeDtypeStruct((B, K), jnp.float32),
        grid_spec=pltpu.PrefetchScalarGridSpec(
            num_scalar_prefetch=0,
            grid=grid,
            in_specs=[
                pl.BlockSpec((B_t, C, HW_t), lambda b, s: (b, 0, s)),
                pl.BlockSpec((C, hidden), lambda b, s: (0, 0)),
                pl.BlockSpec((hidden, K), lambda b, s: (0, 0)),
                pl.BlockSpec((1, K), lambda b, s: (0, 0)),
            ],
            # Output block constant across the HW (reduction) axis -> resident,
            # written only in the pl.when finalize branch.
            out_specs=pl.BlockSpec((B_t, K), lambda b, s: (b, 0)),
            scratch_shapes=[pltpu.VMEM((B_t, C), jnp.float32)],
        ),
        compiler_params=pltpu.CompilerParams(
            dimension_semantics=("parallel", "arbitrary"),
            vmem_limit_bytes=int(vmem_limit),
        ),
        cost_estimate=cost,
    )(x_flat, w1t, w2t, b2s)


def init_params(key, in_channels, ratio, K):
    """kaiming_normal_(mode='fan_out', nonlinearity='relu') init, bias=0."""
    if in_channels != 3:
        hidden = int(in_channels * ratio) + 1
    else:
        hidden = K
    k1, k2 = jax.random.split(key)
    # fan_out for a 1x1 conv = out_channels; gain for relu = sqrt(2)
    std1 = (2.0 / hidden) ** 0.5
    std2 = (2.0 / K) ** 0.5
    w1 = jax.random.normal(k1, (hidden, in_channels), jnp.float32) * std1
    w2 = jax.random.normal(k2, (K, hidden), jnp.float32) * std2
    b2 = jnp.zeros((K,), jnp.float32)
    return w1, w2, b2


def attention2d_reference(x_nchw, w1, w2, b2, temperature):
    """Pure-JAX reference matching the PyTorch module."""
    pooled = jnp.mean(x_nchw.astype(jnp.float32), axis=(2, 3))     # (B, C)
    h = jnp.maximum(pooled @ w1.T, 0.0)                            # (B, hidden)
    logits = h @ w2.T + b2                                         # (B, K)
    return jax.nn.softmax(logits / temperature, axis=1)


if __name__ == "__main__":
    key = jax.random.PRNGKey(0)

    # --- small config consistent with the module (temperature % 3 == 1) ------
    B, C, H, W = 2, 4, 16, 16
    ratio, K, temperature = 0.25, 4, 31
    kx, kp, kx2 = jax.random.split(key, 3)
    x = jax.random.normal(kx, (B, C, H, W), jnp.float32)
    w1, w2, b2 = init_params(kp, C, ratio, K)

    out = jax.block_until_ready(attention2d_forward(x, w1, w2, b2, temperature))
    assert out.shape == (B, K)
    assert jnp.allclose(jnp.sum(out, axis=1), 1.0, atol=1e-5)
    ref = attention2d_reference(x, w1, w2, b2, temperature)
    assert jnp.allclose(out, ref, atol=1e-5), (out, ref)

    # bf16 streaming path (kernel accumulates in f32).
    out_bf16 = jax.block_until_ready(
        attention2d_forward(x.astype(jnp.bfloat16), w1, w2, b2, temperature))
    assert jnp.allclose(out_bf16, ref, atol=1e-2)

    # --- larger multi-tile config: exercises grid=(2, 4) (accumulator carried
    #     across HW steps) and >= 2 parallel batch blocks (v7x megacore) ------
    B2, C2, H2, W2 = 16, 64, 64, 64
    x2 = jax.random.normal(kx2, (B2, C2, H2, W2), jnp.float32)
    w1b, w2b, b2b = init_params(kp, C2, ratio, K)
    out2 = jax.block_until_ready(
        attention2d_forward(x2, w1b, w2b, b2b, temperature,
                            x_tile_bytes=2 * 1024 * 1024))
    ref2 = attention2d_reference(x2, w1b, w2b, b2b, temperature)
    assert out2.shape == (B2, K)
    assert jnp.allclose(jnp.sum(out2, axis=1), 1.0, atol=1e-5)
    assert jnp.allclose(out2, ref2, atol=1e-4), (out2, ref2)

    print("KERNEL_OK")
</pallas_src>

<mosaic_0001>
module attributes {stable_mosaic.version = 11 : i64} {
  func.func @attention2d_kernel(%arg0: i32, %arg1: i32, %arg2: memref<2x4x256xf32, #tpu.memory_space<vmem>>, %arg3: memref<4x2xf32, #tpu.memory_space<vmem>>, %arg4: memref<2x4xf32, #tpu.memory_space<vmem>>, %arg5: memref<1x4xf32, #tpu.memory_space<vmem>>, %arg6: memref<2x4xf32, #tpu.memory_space<vmem>>, %arg7: memref<2x4xf32, #tpu.memory_space<vmem>>) attributes {dimension_semantics = [#tpu.dimension_semantics<parallel>, #tpu.dimension_semantics<arbitrary>], iteration_bounds = array<i64: 1, 1>, scalar_prefetch = 0 : i64, scratch_operands = 1 : i64, tpu.core_type = #tpu.core_type<tc>, window_params = [{transform_indices = @transform_0, window_bounds = array<i64: 2, 4, 256>}, {pipeline_mode = #tpu.pipeline_mode<synchronous>, transform_indices = @transform_1, window_bounds = array<i64: 4, 2>}, {pipeline_mode = #tpu.pipeline_mode<synchronous>, transform_indices = @transform_2, window_bounds = array<i64: 2, 4>}, {pipeline_mode = #tpu.pipeline_mode<synchronous>, transform_indices = @transform_3, window_bounds = array<i64: 1, 4>}, {transform_indices = @transform_4, window_bounds = array<i64: 2, 4>}]} {
    %c0_i32 = arith.constant 0 : i32
    %0 = arith.cmpi eq, %arg1, %c0_i32 : i32
    %1 = arith.extui %0 : i1 to i32
    %c0_i32_0 = arith.constant 0 : i32
    %2 = arith.cmpi ne, %1, %c0_i32_0 : i32
    scf.if %2 {
      %cst_9 = arith.constant 0.000000e+00 : f32
      %11 = vector.broadcast %cst_9 : f32 to vector<2x4xf32>
      %c0_10 = arith.constant 0 : index
      %c0_11 = arith.constant 0 : index
      %12 = vector.load %arg7[%c0_10, %c0_11] : memref<2x4xf32, #tpu.memory_space<vmem>>, vector<2x4xf32>
      tpu.vector_store %arg7[%c0_10, %c0_11], %11 {strides = array<i32>} : memref<2x4xf32, #tpu.memory_space<vmem>>, vector<2x4xf32>,
    } else {
    }
    %c0 = arith.constant 0 : index
    %c0_1 = arith.constant 0 : index
    %3 = vector.load %arg7[%c0, %c0_1] : memref<2x4xf32, #tpu.memory_space<vmem>>, vector<2x4xf32>
    %c0_2 = arith.constant 0 : index
    %c0_3 = arith.constant 0 : index
    %c0_4 = arith.constant 0 : index
    %4 = vector.load %arg2[%c0_2, %c0_3, %c0_4] : memref<2x4x256xf32, #tpu.memory_space<vmem>>, vector<2x4x256xf32>
    %cst = arith.constant dense<0.000000e+00> : vector<2x4xf32>
    %5 = vector.multi_reduction <add>, %4, %cst [2] : vector<2x4x256xf32> to vector<2x4xf32>
    %6 = arith.addf %3, %5 : vector<2x4xf32>
    %c0_5 = arith.constant 0 : index
    %c0_6 = arith.constant 0 : index
    %7 = vector.load %arg7[%c0_5, %c0_6] : memref<2x4xf32, #tpu.memory_space<vmem>>, vector<2x4xf32>
    tpu.vector_store %arg7[%c0_5, %c0_6], %6 {strides = array<i32>} : memref<2x4xf32, #tpu.memory_space<vmem>>, vector<2x4xf32>,
    %c0_i32_7 = arith.constant 0 : i32
    %8 = arith.cmpi eq, %arg1, %c0_i32_7 : i32
    %9 = arith.extui %8 : i1 to i32
    %c0_i32_8 = arith.constant 0 : i32
    %10 = arith.cmpi ne, %9, %c0_i32_8 : i32
    scf.if %10 {
      %c0_9 = arith.constant 0 : index
      %c0_10 = arith.constant 0 : index
      %11 = vector.load %arg7[%c0_9, %c0_10] : memref<2x4xf32, #tpu.memory_space<vmem>>, vector<2x4xf32>
      %c0_11 = arith.constant 0 : index
      %c0_12 = arith.constant 0 : index
      %12 = vector.load %arg3[%c0_11, %c0_12] : memref<4x2xf32, #tpu.memory_space<vmem>>, vector<4x2xf32>
      %cst_13 = arith.constant dense<0.000000e+00> : vector<2x2xf32>
      %13 = tpu.matmul %11, %12, %cst_13 {dimension_numbers = #tpu.dot_dimension_numbers<[1], [0], [0], [1], [0, 0, 1, 1], [], []>} : vector<2x4xf32>, vector<4x2xf32>, vector<2x2xf32> -> vector<2x2xf32>
      %cst_14 = arith.constant 0.000000e+00 : f32
      %14 = vector.broadcast %cst_14 : f32 to vector<2x2xf32>
      %15 = arith.maximumf %13, %14 : vector<2x2xf32>
      %c0_15 = arith.constant 0 : index
      %c0_16 = arith.constant 0 : index
      %16 = vector.load %arg4[%c0_15, %c0_16] : memref<2x4xf32, #tpu.memory_space<vmem>>, vector<2x4xf32>
      %cst_17 = arith.constant dense<0.000000e+00> : vector<2x4xf32>
      %17 = tpu.matmul %15, %16, %cst_17 {dimension_numbers = #tpu.dot_dimension_numbers<[1], [0], [0], [1], [0, 0, 1, 1], [], []>} : vector<2x2xf32>, vector<2x4xf32>, vector<2x4xf32> -> vector<2x4xf32>
      %c0_18 = arith.constant 0 : index
      %c0_19 = arith.constant 0 : index
      %18 = vector.load %arg5[%c0_18, %c0_19] : memref<1x4xf32, #tpu.memory_space<vmem>>, vector<1x4xf32>
      %19 = vector.broadcast %18 : vector<1x4xf32> to vector<2x4xf32>
      %20 = arith.addf %17, %19 : vector<2x4xf32>
      %cst_20 = arith.constant dense<0xFF800000> : vector<2xf32>
      %21 = vector.multi_reduction <maximumf>, %20, %cst_20 [1] : vector<2x4xf32> to vector<2xf32>
      %22 = vector.shape_cast %21 : vector<2xf32> to vector<2x1xf32>
      %23 = vector.broadcast %22 : vector<2x1xf32> to vector<2x4xf32>
      %24 = arith.subf %20, %23 : vector<2x4xf32>
      %25 = math.exp %24 : vector<2x4xf32>
      %cst_21 = arith.constant dense<0.000000e+00> : vector<2xf32>
      %26 = vector.multi_reduction <add>, %25, %cst_21 [1] : vector<2x4xf32> to vector<2xf32>
      %27 = vector.shape_cast %26 : vector<2xf32> to vector<2x1xf32>
      %28 = vector.broadcast %27 : vector<2x1xf32> to vector<2x4xf32>
      %29 = arith.divf %25, %28 : vector<2x4xf32>
      %c0_22 = arith.constant 0 : index
      %c0_23 = arith.constant 0 : index
      %30 = vector.load %arg6[%c0_22, %c0_23] : memref<2x4xf32, #tpu.memory_space<vmem>>, vector<2x4xf32>
      tpu.vector_store %arg6[%c0_22, %c0_23], %29 {strides = array<i32>} : memref<2x4xf32, #tpu.memory_space<vmem>>, vector<2x4xf32>,
    } else {
    }
    return
  }
  func.func @transform_0(%arg0: i32, %arg1: i32) -> (i32, i32, i32) {
    %c0_i32 = arith.constant 0 : i32
    %c0_i32_0 = arith.constant 0 : i32
    return %arg0, %c0_i32, %arg1 : i32, i32, i32
  }
  func.func @transform_1(%arg0: i32, %arg1: i32) -> (i32, i32) {
    %c0_i32 = arith.constant 0 : i32
    %c0_i32_0 = arith.constant 0 : i32
    %c0_i32_1 = arith.constant 0 : i32
    return %c0_i32, %c0_i32_0 : i32, i32
  }
  func.func @transform_2(%arg0: i32, %arg1: i32) -> (i32, i32) {
    %c0_i32 = arith.constant 0 : i32
    %c0_i32_0 = arith.constant 0 : i32
    %c0_i32_1 = arith.constant 0 : i32
    return %c0_i32, %c0_i32_0 : i32, i32
  }
  func.func @transform_3(%arg0: i32, %arg1: i32) -> (i32, i32) {
    %c0_i32 = arith.constant 0 : i32
    %c0_i32_0 = arith.constant 0 : i32
    %c0_i32_1 = arith.constant 0 : i32
    return %c0_i32, %c0_i32_0 : i32, i32
  }
  func.func @transform_4(%arg0: i32, %arg1: i32) -> (i32, i32) {
    %c0_i32 = arith.constant 0 : i32
    %c0_i32_0 = arith.constant 0 : i32
    return %arg0, %c0_i32 : i32, i32
  }
}

</mosaic_0001>

<llo_original>
// kernel: tpu_custom_call.1
$region0: #{tpu_custom_call.1}
  #allocation0 [shape = 'u32[]', space=smem, size = 0x4, offset = 0x4, fixed_abs, tag = 'smem constant byte address 0x4 - core index']
  #allocation1 [shape = 'u32[144,128]{1,0:T(1,128)}', space=vmem, size = 0x12000, scoped, tag = 'internal scratch']
  #allocation2 [shape = 'f32[2,4]{1,0:T(2,128)}', space=vmem, size = 0x400, scoped, tag = 'scratch operand']
  %s0 = inlined_call_operand.hbm [shape: f32[2,4,256], index: 0, kind: input, shape index: {}]
  %s1 = inlined_call_operand.vmem [shape: f32[4,2], index: 1, kind: input, shape index: {}]
  %s2 = inlined_call_operand.vmem [shape: f32[2,4], index: 2, kind: input, shape index: {}]
  %s3 = inlined_call_operand.vmem [shape: f32[1,4], index: 3, kind: input, shape index: {}]
  %s4 = inlined_call_operand.hbm [shape: f32[2,4], index: 4, kind: output, shape index: {}]
  %s5 = sld [smem:[#allocation0]]
  $region38: #{tpu_custom_call.1} parent=0
    _
  %s7 = ssub.s32 1, %s5
  %s8 = scalar_select 0, %s7, %s5
  $region1: #{tpu_custom_call.1} parent=0
    #allocation3 [shape = 'u8[8192]{0}', space=vmem, size = 0x2000, scoped, tag = 'input window, operand 0, single buffered']
    #allocation4 [shape = 's32[1]{0}', space=sflag, size = 0x4, scoped, tag = 'scoped memory for tpu_custom_call.1']
    #allocation5 [shape = 's32[1]{0}', space=sflag, size = 0x4, scoped, tag = 'scoped memory for tpu_custom_call.1']
    #allocation6 [shape = 'u8[1024]{0}', space=vmem, size = 0x400, scoped, tag = 'output window, operand 0, single buffered']
    %9 = vsyncpa [#allocation4], 0
    %10 = vsyncpa [#allocation5], 0
    // Predicated region
    $region2: #{tpu_custom_call.1} parent=1 // pred_check
      _
    $region3: #{tpu_custom_call.1} parent=1 // pred_check_branch
      %12 = sbr.rel (0) target = $region5
    $region4: #{tpu_custom_call.1} parent=1 // pred_region
      %s14 = ssub.s32 256, 256
      %15 = vsyncadd [#allocation4], %s14
      %s16 = sshll.u32 [#allocation3], 4
      %s17 = int_to_ptr.vmem [resolvable:$true] %s16
      %22 = dma.hbm_to_vmem [thread:$0]  %s0, 256, %s17, [#allocation4], 128, 128, 8
    $region5: #{tpu_custom_call.1} parent=1 // pred_fallthru
      _
    // Predicated region
    $region6: #{tpu_custom_call.1} parent=1 // pred_check
      _
    $region7: #{tpu_custom_call.1} parent=1 // pred_check_branch
      %24 = sbr.rel (0) target = $region9
    $region8: #{tpu_custom_call.1} parent=1 // pred_region
      _
    $region9: #{tpu_custom_call.1} parent=1 // pred_fallthru
      _
    // Predicated region
    $region10: #{tpu_custom_call.1} parent=1 // pred_check
      _
    $region11: #{tpu_custom_call.1} parent=1 // pred_check_branch
      %26 = sbr.rel (0) target = $region13
    $region12: #{tpu_custom_call.1} parent=1 // pred_region
      _
    $region13: #{tpu_custom_call.1} parent=1 // pred_fallthru
      _
    // Predicated region
    $region14: #{tpu_custom_call.1} parent=1 // pred_check
      _
    $region15: #{tpu_custom_call.1} parent=1 // pred_check_branch
      %28 = sbr.rel (0) target = $region17
    $region16: #{tpu_custom_call.1} parent=1 // pred_region
      _
    $region17: #{tpu_custom_call.1} parent=1 // pred_fallthru
      _
    // Predicated region
    $region18: #{tpu_custom_call.1} parent=1 // pred_check
      _
    $region19: #{tpu_custom_call.1} parent=1 // pred_check_branch
      %30 = sbr.rel (0) target = $region21
    $region20: #{tpu_custom_call.1} parent=1 // pred_region
      %31 = dma.done [#allocation4], 256
    $region21: #{tpu_custom_call.1} parent=1 // pred_fallthru
      _
    %p32 = scmp.eq.s32.totalorder 0, 0
    // Predicated region
    $region22: #{tpu_custom_call.1} parent=1 // pred_check
      %p33 = pneg %p32
    $region23: #{tpu_custom_call.1} parent=1 // pred_check_branch
      %35 = sbr.rel (%p33) target = $region25
    $region24: #{tpu_custom_call.1} parent=1 // pred_region
      %vm36 = vcmask 25600
      %37 = vst.msk [vmem:[#allocation2] sm:$0x3] %vm36, 0.0
    $region25: #{tpu_custom_call.1} parent=1 // pred_fallthru
      _
    %v38 = vld [vmem:[#allocation2] sm:$0x3]
    %v39 = vld [vmem:[#allocation3] sm:$0xff]
    %v40 = vld [vmem:[#allocation3 + $0x8] sm:$0xff]
    %v43 = vcombine.high %v39, %v39
    %v44 = vcombine.high %v40, %v40
    %vm47 = vcmask 1043456
    %v48 = vsel %vm47, %v39, 0.0
    %v49 = vsel %vm47, %v43, 0.0
    %v50 = vadd.f32 %v48, %v49
    %51 = vadd.xlane.f32.xlu0 %v50
    %v52 = vpop.xlane.xlu0 %51
    %v53 = vsel %vm47, %v40, 0.0
    %v54 = vsel %vm47, %v44, 0.0
    %v55 = vadd.f32 %v53, %v54
    %56 = vadd.xlane.f32.xlu0 %v55
    %v57 = vpop.xlane.xlu0 %56
    %v60 = vlaneseq
    %v61 = vand.u32 %v60, 127
    %v62 = vlaneseq
    %v63 = vshrl.u32 %v62, 7
    %v64 = vsub.s32 %v61, %v63
    %v65 = vrot.slane %v52, %v64
    %v66 = vlaneseq
    %v67 = vshrl.u32 %v66, 7
    %v68 = vsub.s32 %v61, %v67
    %v69 = vrot.slane %v57, %v68
    %vm70 = vcmask 1041409
    %v71 = vsel %vm70, %v69, %v65
    %v73 = vadd.f32 %v38, %v71
    %vm74 = vcmask 25600
    %75 = vst.msk [vmem:[#allocation2] sm:$0x3] %vm74, %v73
    // Predicated region
    $region26: #{tpu_custom_call.1} parent=1 // pred_check
      %p76 = pneg %p32
    $region27: #{tpu_custom_call.1} parent=1 // pred_check_branch
      %78 = sbr.rel (%p76) target = $region29
    $region28: #{tpu_custom_call.1} parent=1 // pred_region
      %v79 = vld [vmem:[#allocation2] sm:$0x3]
      %v80 = vld [vmem:[%s1] sm:$0xf]
      %vm81 = vcmask 31744
      %v83 = vsel %vm81, %v79, 0
      %v86 = vsel %vm47, %v80, 0
      %88 = vmatprep.subr.mxu0 0.0
      %89 = vmatpush1.msra.mxu0 %v86
      %90 = vmatprep.subr.mxu0 0.0
      %91 = vmatpush1.msra.mxu0 0.0
      %92 = vmatprep.subr.mxu0 0.0
      %93 = vmatpush1.msra.mxu0 0.0
      %94 = vmatprep.subr.mxu0 0.0
      %95 = vmatpush1.msra.mxu0 0.0
      %96 = vmatprep.subr.mxu0 0.0
      %97 = vmatpush1.msra.mxu0 0.0
      %98 = vmatprep.subr.mxu0 0.0
      %99 = vmatpush1.msra.mxu0 0.0
      %100 = vmatprep.subr.mxu0 0.0
      %101 = vmatpush1.msra.mxu0 0.0
      %102 = vmatprep.subr.mxu0 0.0
      %103 = vmatpush1.msra.mxu0 0.0
      %104 = vmatprep.subr.mxu0 0.0
      %105 = vmatpush1.msra.mxu0 0.0
      %106 = vmatprep.subr.mxu0 0.0
      %107 = vmatpush1.msra.mxu0 0.0
      %108 = vmatprep.subr.mxu0 0.0
      %109 = vmatpush1.msra.mxu0 0.0
      %110 = vmatprep.subr.mxu0 0.0
      %111 = vmatpush1.msra.mxu0 0.0
      %112 = vmatprep.subr.mxu0 0.0
      %113 = vmatpush1.msra.mxu0 0.0
      %114 = vmatprep.subr.mxu0 0.0
      %115 = vmatpush1.msra.mxu0 0.0
      %116 = vmatprep.subr.mxu0 0.0
      %117 = vmatpush1.msra.mxu0 0.0
      %118 = vmatprep.subr.mxu0 0.0
      %119 = vmatpush1.msra.mxu0 0.0
      %120 = vmatprep.subr.mxu0 0.0
      %121 = vmatpush1.msra.mxu0 0.0
      %122 = vmatprep.subr.mxu0 0.0
      %123 = vmatpush1.msra.mxu0 0.0
      %124 = vmatprep.subr.mxu0 0.0
      %125 = vmatpush1.msra.mxu0 0.0
      %126 = vmatprep.subr.mxu0 0.0
      %127 = vmatpush1.msra.mxu0 0.0
      %128 = vmatprep.subr.mxu0 0.0
      %129 = vmatpush1.msra.mxu0 0.0
      %130 = vmatprep.subr.mxu0 0.0
      %131 = vmatpush1.msra.mxu0 0.0
      %132 = vmatprep.subr.mxu0 0.0
      %133 = vmatpush1.msra.mxu0 0.0
      %134 = vmatprep.subr.mxu0 0.0
      %135 = vmatpush1.msra.mxu0 0.0
      %136 = vmatprep.subr.mxu0 0.0
      %137 = vmatpush1.msra.mxu0 0.0
      %138 = vmatprep.subr.mxu0 0.0
      %139 = vmatpush1.msra.mxu0 0.0
      %140 = vmatprep.subr.mxu0 0.0
      %141 = vmatpush1.msra.mxu0 0.0
      %142 = vmatprep.subr.mxu0 0.0
      %143 = vmatpush1.msra.mxu0 0.0
      %144 = vmatprep.subr.mxu0 0.0
      %145 = vmatpush1.msra.mxu0 0.0
      %146 = vmatprep.subr.mxu0 0.0
      %147 = vmatpush1.msra.mxu0 0.0
      %148 = vmatprep.subr.mxu0 0.0
      %149 = vmatpush1.msra.mxu0 0.0
      %150 = vmatprep.subr.mxu0 0.0
      %151 = vmatpush1.msra.mxu0 0.0
      %152 = vmatprep.mubr.f32.mxu0 0.0
      %153 = vmatmul.mubr.f32.gmra.mrb[0].mxu0 %v83
      %v154 = vpop.f32.mrb[0].mxu0
      %v155 = vadd.f32 0.0, %v154
      %v156 = vpop.f32.mrb[0].mxu0
      %157 = vdwg.mxu0
      %v158 = vmax.f32 %v155, 0.0
      %v159 = vld [vmem:[%s2] sm:$0x3]
      %v160 = vld [vmem:[%s3] sm:$0x1]
      %v162 = vlaneseq
      %v163 = vshrl.u32 %v162, 7
      %v164 = vsub.s32 0, %v163
      %v165 = vrot.slane %v160, %v164
      %vm167 = vcmask 15360
      %v169 = vsel %vm167, %v158, 0
      %vm171 = vcmask 1041408
      %v173 = vsel %vm171, %v159, 0
      %175 = vmatprep.subr.mxu0 0.0
      %176 = vmatpush1.msra.mxu0 %v173
      %177 = vmatprep.subr.mxu0 0.0
      %178 = vmatpush1.msra.mxu0 0.0
      %179 = vmatprep.subr.mxu0 0.0
      %180 = vmatpush1.msra.mxu0 0.0
      %181 = vmatprep.subr.mxu0 0.0
      %182 = vmatpush1.msra.mxu0 0.0
      %183 = vmatprep.subr.mxu0 0.0
      %184 = vmatpush1.msra.mxu0 0.0
      %185 = vmatprep.subr.mxu0 0.0
      %186 = vmatpush1.msra.mxu0 0.0
      %187 = vmatprep.subr.mxu0 0.0
      %188 = vmatpush1.msra.mxu0 0.0
      %189 = vmatprep.subr.mxu0 0.0
      %190 = vmatpush1.msra.mxu0 0.0
      %191 = vmatprep.subr.mxu0 0.0
      %192 = vmatpush1.msra.mxu0 0.0
      %193 = vmatprep.subr.mxu0 0.0
      %194 = vmatpush1.msra.mxu0 0.0
      %195 = vmatprep.subr.mxu0 0.0
      %196 = vmatpush1.msra.mxu0 0.0
      %197 = vmatprep.subr.mxu0 0.0
      %198 = vmatpush1.msra.mxu0 0.0
      %199 = vmatprep.subr.mxu0 0.0
      %200 = vmatpush1.msra.mxu0 0.0
      %201 = vmatprep.subr.mxu0 0.0
      %202 = vmatpush1.msra.mxu0 0.0
      %203 = vmatprep.subr.mxu0 0.0
      %204 = vmatpush1.msra.mxu0 0.0
      %205 = vmatprep.subr.mxu0 0.0
      %206 = vmatpush1.msra.mxu0 0.0
      %207 = vmatprep.subr.mxu0 0.0
      %208 = vmatpush1.msra.mxu0 0.0
      %209 = vmatprep.subr.mxu0 0.0
      %210 = vmatpush1.msra.mxu0 0.0
      %211 = vmatprep.subr.mxu0 0.0
      %212 = vmatpush1.msra.mxu0 0.0
      %213 = vmatprep.subr.mxu0 0.0
      %214 = vmatpush1.msra.mxu0 0.0
      %215 = vmatprep.subr.mxu0 0.0
      %216 = vmatpush1.msra.mxu0 0.0
      %217 = vmatprep.subr.mxu0 0.0
      %218 = vmatpush1.msra.mxu0 0.0
      %219 = vmatprep.subr.mxu0 0.0
      %220 = vmatpush1.msra.mxu0 0.0
      %221 = vmatprep.subr.mxu0 0.0
      %222 = vmatpush1.msra.mxu0 0.0
      %223 = vmatprep.subr.mxu0 0.0
      %224 = vmatpush1.msra.mxu0 0.0
      %225 = vmatprep.subr.mxu0 0.0
      %226 = vmatpush1.msra.mxu0 0.0
      %227 = vmatprep.subr.mxu0 0.0
      %228 = vmatpush1.msra.mxu0 0.0
      %229 = vmatprep.subr.mxu0 0.0
      %230 = vmatpush1.msra.mxu0 0.0
      %231 = vmatprep.subr.mxu0 0.0
      %232 = vmatpush1.msra.mxu0 0.0
      %233 = vmatprep.subr.mxu0 0.0
      %234 = vmatpush1.msra.mxu0 0.0
      %235 = vmatprep.subr.mxu0 0.0
      %236 = vmatpush1.msra.mxu0 0.0
      %237 = vmatprep.subr.mxu0 0.0
      %238 = vmatpush1.msra.mxu0 0.0
      %239 = vmatprep.mubr.f32.mxu0 0.0
      %240 = vmatmul.mubr.f32.gmra.mrb[0].mxu0 %v169
      %v241 = vpop.f32.mrb[0].mxu0
      %v242 = vadd.f32 %v165, %v241
      %v243 = vpop.f32.mrb[0].mxu0
      %244 = vdwg.mxu0
      %v245 = vsel %vm74, %v242, -inf
      %246 = vmax.xlane.f32.xlu0 %v245
      %v247 = vpop.xlane.xlu0 %246
      %v248 = vsub.f32 %v242, %v247
      %v249 = vmul.f32 %v248, 1.442695
      %v250 = vpow.pop %v249
      %v251 = vsel %vm74, %v250, 0.0
      %252 = vadd.xlane.f32.xlu0 %v251
      %v253 = vpop.xlane.xlu0 %252
      %v254 = vrcp.pop %v253
      %v255 = vmul.f32 %v250, %v254
      %256 = vst.msk [vmem:[#allocation6] sm:$0x3] %vm74, %v255
    $region29: #{tpu_custom_call.1} parent=1 // pred_fallthru
      _
    // Predicated region
    $region30: #{tpu_custom_call.1} parent=1 // pred_check
      _
    $region31: #{tpu_custom_call.1} parent=1 // pred_check_branch
      %258 = sbr.rel (0) target = $region33
    $region32: #{tpu_custom_call.1} parent=1 // pred_region
      %s260 = ssub.s32 32, 32
      %261 = vsyncadd [#allocation5], %s260
      %s263 = sshll.u32 [#allocation6], 4
      %s264 = int_to_ptr.vmem [resolvable:$true] %s263
      %266 = dma.vmem_to_hbm [thread:$0]  %s264, 32, %s4, [#allocation5]
    $region33: #{tpu_custom_call.1} parent=1 // pred_fallthru
      _
    // Predicated region
    $region34: #{tpu_custom_call.1} parent=1 // pred_check
      _
    $region35: #{tpu_custom_call.1} parent=1 // pred_check_branch
      %268 = sbr.rel (0) target = $region37
    $region36: #{tpu_custom_call.1} parent=1 // pred_region
      %269 = dma.done [#allocation5], 32
    $region37: #{tpu_custom_call.1} parent=1 // pred_fallthru
      _
    %270 = vsyncpa [#allocation4], 1
    %271 = vsyncpa [#allocation5], 1

</llo_original>
